<compile_context>
chip_gen: v7x
topology: tpu7x:2x2x1
jax: 0.10.0
libtpu: 0.0.40
codegen_flags: <defaults>
</compile_context>

<pallas_src>
import functools

import jax
import jax.numpy as jnp
from jax.experimental import pallas as pl
from jax.experimental.pallas import tpu as pltpu

C_IN = 64
C_OUT = 64
KH = KW = 3


def _conv_relu_kernel(main_ref, halo_ref, w_ref, o_ref, lhs_ref, p_ref, *,
                      tile_h, w_out):
    """One (batch element, H band) tile.

    main_ref: (1, tile_h, W+2, 64) bf16   padded rows [t*tile_h, (t+1)*tile_h)
    halo_ref: (1, 2,      W+2, 64) bf16   padded rows [(t+1)*tile_h, ...+2)
    w_ref:    (192, 192)           bf16   [dx*64+ci, dy*64+co]
    o_ref:    (1, tile_h*W, 64)    bf16
    lhs_ref:  ((tile_h+2)*W, 192)  bf16   scratch: dx-folded LHS
    p_ref:    ((tile_h+2)*W, 192)  f32    scratch: per-dy partial sums
    """
    m = tile_h * w_out
    # Build the dx-folded LHS in VMEM: lhs[r*W + x, dx*64+ci] = band[r, x+dx, ci].
    for dx in range(KW):
        g = slice(dx * C_IN, (dx + 1) * C_IN)
        lhs_ref[0:m, g] = main_ref[0, :, dx:dx + w_out, :].reshape(m, C_IN)
        lhs_ref[m:, g] = halo_ref[0, :, dx:dx + w_out, :].reshape(2 * w_out, C_IN)

    # Single MXU pass: M=(tile_h+2)*W, K=192 (dx,ci), N=192 (dy,co), f32 acc.
    p_ref[...] = jnp.dot(lhs_ref[...], w_ref[...],
                         preferred_element_type=jnp.float32)

    # dy combine: out[y*W + x, co] = sum_dy P[(y+dy)*W + x, dy*64 + co].
    # Row shifts (W, 2W) are sublane-aligned because W % 8 == 0.
    acc = (p_ref[0:m, 0:C_OUT]
           + p_ref[w_out:w_out + m, C_OUT:2 * C_OUT]
           + p_ref[2 * w_out:2 * w_out + m, 2 * C_OUT:3 * C_OUT])
    o_ref[0] = jnp.maximum(acc, 0.0).astype(o_ref.dtype)


def _round_up(v, m):
    return -(-v // m) * m


def conv_relu_block(x_nchw, weight, *, tile_h=None, target_pixels=8192):
    """Forward of Conv_ReLU_Block.

    x_nchw: (N, 64, H, W) float32
    weight: (64, 64, 3, 3) float32  (PyTorch OIHW layout)
    returns: (N, 64, H, W) float32
    """
    N, C, H, W = x_nchw.shape
    assert C == C_IN
    assert weight.shape == (C_OUT, C_IN, KH, KW)
    out_dtype = x_nchw.dtype

    # ---- geometry: W padded to a multiple of 8 (aligned in-kernel row shifts),
    # even band height, H padded to a whole number of bands.
    W_eff = _round_up(W, 8)
    if tile_h is None:
        t_target = max(2, target_pixels // W_eff)
        n_bands = max(1, -(-H // t_target))
    else:
        n_bands = max(1, -(-H // int(tile_h)))
    T = -(-H // n_bands)
    T += T % 2                         # halo block index needs an even tile_h
    H_eff = T * n_bands
    Wp = W_eff + 2

    # ---- wrapper glue (required by the NCHW f32 interface; one pass each way).
    x_nhwc = jnp.transpose(x_nchw, (0, 2, 3, 1)).astype(jnp.bfloat16)
    x_pad = jnp.pad(x_nhwc, ((0, 0),
                             (1, 1 + H_eff - H),
                             (1, 1 + W_eff - W),
                             (0, 0)))                       # (N, H_eff+2, Wp, 64)

    # OIHW -> [dx*C_IN + ci, dy*C_OUT + co]: dx folded into K, dy folded into N.
    w2 = jnp.transpose(weight, (3, 1, 2, 0)).reshape(KW * C_IN, KH * C_OUT)
    w2 = w2.astype(jnp.bfloat16)

    kernel = functools.partial(_conv_relu_kernel, tile_h=T, w_out=W_eff)

    band_rows = (T + 2) * W_eff
    half_t = T // 2
    flops = 2 * N * H_eff * W_eff * KH * KW * C_IN * C_OUT
    bytes_accessed = (int(x_pad.size) * 2 + int(w2.size) * 2
                      + N * H_eff * W_eff * C_OUT * 2)

    out_flat = pl.pallas_call(
        kernel,
        out_shape=jax.ShapeDtypeStruct((N, H_eff * W_eff, C_OUT), jnp.bfloat16),
        grid_spec=pltpu.PrefetchScalarGridSpec(
            num_scalar_prefetch=0,
            grid=(N, n_bands),
            in_specs=[
                # main rows of band t: padded rows [t*T, (t+1)*T)
                pl.BlockSpec((1, T, Wp, C_IN), lambda n, t: (n, t, 0, 0)),
                # 2-row halo of band t: padded rows [(t+1)*T, (t+1)*T + 2)
                pl.BlockSpec((1, 2, Wp, C_IN),
                             lambda n, t: (n, (t + 1) * half_t, 0, 0)),
                # resident weights
                pl.BlockSpec((KW * C_IN, KH * C_OUT), lambda n, t: (0, 0)),
            ],
            out_specs=pl.BlockSpec((1, T * W_eff, C_OUT),
                                   lambda n, t: (n, t, 0)),
            scratch_shapes=[
                pltpu.VMEM((band_rows, KW * C_IN), jnp.bfloat16),
                pltpu.VMEM((band_rows, KH * C_OUT), jnp.float32),
            ],
        ),
        compiler_params=pltpu.CompilerParams(
            dimension_semantics=("parallel", "parallel"),
            vmem_limit_bytes=48 * 1024 * 1024),
        cost_estimate=pl.CostEstimate(
            flops=flops, transcendentals=0, bytes_accessed=bytes_accessed),
    )(x_pad, x_pad, w2)

    out = out_flat.reshape(N, H_eff, W_eff, C_OUT)[:, :H, :W, :]
    return jnp.transpose(out, (0, 3, 1, 2)).astype(out_dtype)


if __name__ == "__main__":
    key = jax.random.PRNGKey(0)
    kx, kw = jax.random.split(key)

    N, H, W = 2, 16, 16
    x = jax.random.normal(kx, (N, C_IN, H, W), dtype=jnp.float32)
    # Deterministic synthetic weights (roughly PyTorch's kaiming-uniform scale).
    fan_in = C_IN * KH * KW
    bound = 1.0 / (fan_in ** 0.5)
    weight = jax.random.uniform(kw, (C_OUT, C_IN, KH, KW),
                                dtype=jnp.float32, minval=-bound, maxval=bound)

    # tile_h=8 -> grid (2 batch, 2 H-bands): exercises the copy-free halo blocks.
    out = jax.block_until_ready(conv_relu_block(x, weight, tile_h=8))

    # Reference with matching precision: bf16 operands, f32 accumulation, ReLU,
    # bf16 output rounding (the kernel stores bf16, f32 cast happens once after).
    ref = jax.lax.conv_general_dilated(
        x.astype(jnp.bfloat16), weight.astype(jnp.bfloat16),
        window_strides=(1, 1), padding=((1, 1), (1, 1)),
        dimension_numbers=("NCHW", "OIHW", "NCHW"),
        preferred_element_type=jnp.float32)
    ref = jnp.maximum(ref, 0.0).astype(jnp.bfloat16).astype(jnp.float32)

    assert out.shape == (N, C_OUT, H, W)
    assert out.dtype == jnp.float32
    assert jnp.allclose(out, ref, atol=2e-2, rtol=2e-2)

    print("KERNEL_OK")
</pallas_src>

<mosaic_0001>
module attributes {stable_mosaic.version = 11 : i64} {
  func.func @_conv_relu_kernel(%arg0: i32, %arg1: i32, %arg2: memref<1x8x18x64xbf16, #tpu.memory_space<vmem>>, %arg3: memref<1x2x18x64xbf16, #tpu.memory_space<vmem>>, %arg4: memref<192x192xbf16, #tpu.memory_space<vmem>>, %arg5: memref<1x128x64xbf16, #tpu.memory_space<vmem>>, %arg6: memref<160x192xbf16, #tpu.memory_space<vmem>>, %arg7: memref<160x192xf32, #tpu.memory_space<vmem>>) attributes {dimension_semantics = [#tpu.dimension_semantics<parallel>, #tpu.dimension_semantics<parallel>], iteration_bounds = array<i64: 2, 2>, scalar_prefetch = 0 : i64, scratch_operands = 2 : i64, tpu.core_type = #tpu.core_type<tc>, window_params = [{transform_indices = @transform_0, window_bounds = array<i64: 1, 8, 18, 64>}, {transform_indices = @transform_1, window_bounds = array<i64: 1, 2, 18, 64>}, {pipeline_mode = #tpu.pipeline_mode<synchronous>, transform_indices = @transform_2, window_bounds = array<i64: 192, 192>}, {transform_indices = @transform_3, window_bounds = array<i64: 1, 128, 64>}]} {
    %c0 = arith.constant 0 : index
    %c0_0 = arith.constant 0 : index
    %c0_1 = arith.constant 0 : index
    %c0_2 = arith.constant 0 : index
    %0 = vector.load %arg2[%c0, %c0_0, %c0_1, %c0_2] : memref<1x8x18x64xbf16, #tpu.memory_space<vmem>>, vector<1x8x16x64xbf16>
    %1 = vector.shape_cast %0 : vector<1x8x16x64xbf16> to vector<8x16x64xbf16>
    %2 = vector.shape_cast %1 : vector<8x16x64xbf16> to vector<128x64xbf16>
    %c0_3 = arith.constant 0 : index
    %c0_4 = arith.constant 0 : index
    %3 = vector.load %arg6[%c0_3, %c0_4] : memref<160x192xbf16, #tpu.memory_space<vmem>>, vector<128x64xbf16>
    tpu.vector_store %arg6[%c0_3, %c0_4], %2 {strides = array<i32>} : memref<160x192xbf16, #tpu.memory_space<vmem>>, vector<128x64xbf16>,
    %c0_5 = arith.constant 0 : index
    %c0_6 = arith.constant 0 : index
    %c0_7 = arith.constant 0 : index
    %c0_8 = arith.constant 0 : index
    %4 = vector.load %arg3[%c0_5, %c0_6, %c0_7, %c0_8] : memref<1x2x18x64xbf16, #tpu.memory_space<vmem>>, vector<1x2x16x64xbf16>
    %5 = vector.shape_cast %4 : vector<1x2x16x64xbf16> to vector<2x16x64xbf16>
    %6 = vector.shape_cast %5 : vector<2x16x64xbf16> to vector<32x64xbf16>
    %c128 = arith.constant 128 : index
    %c0_9 = arith.constant 0 : index
    %7 = vector.load %arg6[%c128, %c0_9] : memref<160x192xbf16, #tpu.memory_space<vmem>>, vector<32x64xbf16>
    tpu.vector_store %arg6[%c128, %c0_9], %6 {strides = array<i32>} : memref<160x192xbf16, #tpu.memory_space<vmem>>, vector<32x64xbf16>,
    %c0_10 = arith.constant 0 : index
    %c0_11 = arith.constant 0 : index
    %c1 = arith.constant 1 : index
    %c0_12 = arith.constant 0 : index
    %8 = vector.load %arg2[%c0_10, %c0_11, %c1, %c0_12] : memref<1x8x18x64xbf16, #tpu.memory_space<vmem>>, vector<1x8x16x64xbf16>
    %9 = vector.shape_cast %8 : vector<1x8x16x64xbf16> to vector<8x16x64xbf16>
    %10 = vector.shape_cast %9 : vector<8x16x64xbf16> to vector<128x64xbf16>
    %c0_13 = arith.constant 0 : index
    %c64 = arith.constant 64 : index
    %11 = vector.load %arg6[%c0_13, %c64] : memref<160x192xbf16, #tpu.memory_space<vmem>>, vector<128x64xbf16>
    tpu.vector_store %arg6[%c0_13, %c64], %10 {strides = array<i32>} : memref<160x192xbf16, #tpu.memory_space<vmem>>, vector<128x64xbf16>,
    %c0_14 = arith.constant 0 : index
    %c0_15 = arith.constant 0 : index
    %c1_16 = arith.constant 1 : index
    %c0_17 = arith.constant 0 : index
    %12 = vector.load %arg3[%c0_14, %c0_15, %c1_16, %c0_17] : memref<1x2x18x64xbf16, #tpu.memory_space<vmem>>, vector<1x2x16x64xbf16>
    %13 = vector.shape_cast %12 : vector<1x2x16x64xbf16> to vector<2x16x64xbf16>
    %14 = vector.shape_cast %13 : vector<2x16x64xbf16> to vector<32x64xbf16>
    %c128_18 = arith.constant 128 : index
    %c64_19 = arith.constant 64 : index
    %15 = vector.load %arg6[%c128_18, %c64_19] : memref<160x192xbf16, #tpu.memory_space<vmem>>, vector<32x64xbf16>
    tpu.vector_store %arg6[%c128_18, %c64_19], %14 {strides = array<i32>} : memref<160x192xbf16, #tpu.memory_space<vmem>>, vector<32x64xbf16>,
    %c0_20 = arith.constant 0 : index
    %c0_21 = arith.constant 0 : index
    %c2 = arith.constant 2 : index
    %c0_22 = arith.constant 0 : index
    %16 = vector.load %arg2[%c0_20, %c0_21, %c2, %c0_22] : memref<1x8x18x64xbf16, #tpu.memory_space<vmem>>, vector<1x8x16x64xbf16>
    %17 = vector.shape_cast %16 : vector<1x8x16x64xbf16> to vector<8x16x64xbf16>
    %18 = vector.shape_cast %17 : vector<8x16x64xbf16> to vector<128x64xbf16>
    %c0_23 = arith.constant 0 : index
    %c128_24 = arith.constant 128 : index
    %19 = vector.load %arg6[%c0_23, %c128_24] : memref<160x192xbf16, #tpu.memory_space<vmem>>, vector<128x64xbf16>
    tpu.vector_store %arg6[%c0_23, %c128_24], %18 {strides = array<i32>} : memref<160x192xbf16, #tpu.memory_space<vmem>>, vector<128x64xbf16>,
    %c0_25 = arith.constant 0 : index
    %c0_26 = arith.constant 0 : index
    %c2_27 = arith.constant 2 : index
    %c0_28 = arith.constant 0 : index
    %20 = vector.load %arg3[%c0_25, %c0_26, %c2_27, %c0_28] : memref<1x2x18x64xbf16, #tpu.memory_space<vmem>>, vector<1x2x16x64xbf16>
    %21 = vector.shape_cast %20 : vector<1x2x16x64xbf16> to vector<2x16x64xbf16>
    %22 = vector.shape_cast %21 : vector<2x16x64xbf16> to vector<32x64xbf16>
    %c128_29 = arith.constant 128 : index
    %c128_30 = arith.constant 128 : index
    %23 = vector.load %arg6[%c128_29, %c128_30] : memref<160x192xbf16, #tpu.memory_space<vmem>>, vector<32x64xbf16>
    tpu.vector_store %arg6[%c128_29, %c128_30], %22 {strides = array<i32>} : memref<160x192xbf16, #tpu.memory_space<vmem>>, vector<32x64xbf16>,
    %c0_31 = arith.constant 0 : index
    %c0_32 = arith.constant 0 : index
    %24 = vector.load %arg6[%c0_31, %c0_32] : memref<160x192xbf16, #tpu.memory_space<vmem>>, vector<160x192xbf16>
    %c0_33 = arith.constant 0 : index
    %c0_34 = arith.constant 0 : index
    %25 = vector.load %arg4[%c0_33, %c0_34] : memref<192x192xbf16, #tpu.memory_space<vmem>>, vector<192x192xbf16>
    %cst = arith.constant dense<0.000000e+00> : vector<160x192xf32>
    %26 = tpu.matmul %24, %25, %cst {dimension_numbers = #tpu.dot_dimension_numbers<[1], [0], [0], [1], [0, 0, 1, 1], [], []>} : vector<160x192xbf16>, vector<192x192xbf16>, vector<160x192xf32> -> vector<160x192xf32>
    %c0_35 = arith.constant 0 : index
    %c0_36 = arith.constant 0 : index
    %27 = vector.load %arg7[%c0_35, %c0_36] : memref<160x192xf32, #tpu.memory_space<vmem>>, vector<160x192xf32>
    tpu.vector_store %arg7[%c0_35, %c0_36], %26 {strides = array<i32>} : memref<160x192xf32, #tpu.memory_space<vmem>>, vector<160x192xf32>,
    %c0_37 = arith.constant 0 : index
    %c0_38 = arith.constant 0 : index
    %28 = vector.load %arg7[%c0_37, %c0_38] : memref<160x192xf32, #tpu.memory_space<vmem>>, vector<128x64xf32>
    %c16 = arith.constant 16 : index
    %c64_39 = arith.constant 64 : index
    %29 = vector.load %arg7[%c16, %c64_39] : memref<160x192xf32, #tpu.memory_space<vmem>>, vector<128x64xf32>
    %30 = arith.addf %28, %29 : vector<128x64xf32>
    %c32 = arith.constant 32 : index
    %c128_40 = arith.constant 128 : index
    %31 = vector.load %arg7[%c32, %c128_40] : memref<160x192xf32, #tpu.memory_space<vmem>>, vector<128x64xf32>
    %32 = arith.addf %30, %31 : vector<128x64xf32>
    %cst_41 = arith.constant 0.000000e+00 : f32
    %33 = vector.broadcast %cst_41 : f32 to vector<128x64xf32>
    %34 = arith.maximumf %32, %33 : vector<128x64xf32>
    %35 = arith.truncf %34 : vector<128x64xf32> to vector<128x64xbf16>
    %c0_42 = arith.constant 0 : index
    %c0_43 = arith.constant 0 : index
    %c0_44 = arith.constant 0 : index
    %36 = vector.load %arg5[%c0_42, %c0_43, %c0_44] : memref<1x128x64xbf16, #tpu.memory_space<vmem>>, vector<1x128x64xbf16>
    %37 = vector.shape_cast %36 : vector<1x128x64xbf16> to vector<128x64xbf16>
    %38 = vector.shape_cast %35 : vector<128x64xbf16> to vector<1x128x64xbf16>
    tpu.vector_store %arg5[%c0_42, %c0_43, %c0_44], %38 {strides = array<i32>} : memref<1x128x64xbf16, #tpu.memory_space<vmem>>, vector<1x128x64xbf16>,
    return
  }
  func.func @transform_0(%arg0: i32, %arg1: i32) -> (i32, i32, i32, i32) {
    %c0_i32 = arith.constant 0 : i32
    %c0_i32_0 = arith.constant 0 : i32
    %c0_i32_1 = arith.constant 0 : i32
    return %arg0, %arg1, %c0_i32, %c0_i32_0 : i32, i32, i32, i32
  }
  func.func @transform_1(%arg0: i32, %arg1: i32) -> (i32, i32, i32, i32) {
    %c1_i32 = arith.constant 1 : i32
    %0 = arith.addi %arg1, %c1_i32 : i32
    %c4_i32 = arith.constant 4 : i32
    %1 = arith.muli %0, %c4_i32 : i32
    %c0_i32 = arith.constant 0 : i32
    %c0_i32_0 = arith.constant 0 : i32
    %c0_i32_1 = arith.constant 0 : i32
    return %arg0, %1, %c0_i32, %c0_i32_0 : i32, i32, i32, i32
  }
  func.func @transform_2(%arg0: i32, %arg1: i32) -> (i32, i32) {
    %c0_i32 = arith.constant 0 : i32
    %c0_i32_0 = arith.constant 0 : i32
    %c0_i32_1 = arith.constant 0 : i32
    return %c0_i32, %c0_i32_0 : i32, i32
  }
  func.func @transform_3(%arg0: i32, %arg1: i32) -> (i32, i32, i32) {
    %c0_i32 = arith.constant 0 : i32
    %c0_i32_0 = arith.constant 0 : i32
    return %arg0, %arg1, %c0_i32 : i32, i32, i32
  }
}

</mosaic_0001>

<llo_original>
// kernel: tpu_custom_call.1
$region0: #{tpu_custom_call.1}
  #allocation0 [shape = 'u32[]', space=smem, size = 0x4, offset = 0x4, fixed_abs, tag = 'smem constant byte address 0x4 - core index']
  #allocation1 [shape = 'u32[144,128]{1,0:T(1,128)}', space=vmem, size = 0x12000, scoped, tag = 'internal scratch']
  #allocation2 [shape = 'bf16[160,192]{1,0:T(16,128)(2,1)}', space=vmem, size = 0x14000, scoped, tag = 'scratch operand']
  #allocation3 [shape = 'f32[160,192]{1,0:T(8,128)}', space=vmem, size = 0x28000, scoped, tag = 'scratch operand']
  %s0 = inlined_call_operand.vmem [shape: bf16[2,18,18,64], index: 0, kind: input, shape index: {}]
  %s1 = inlined_call_operand.vmem [shape: bf16[2,18,18,64], index: 1, kind: input, shape index: {}]
  %s2 = inlined_call_operand.vmem [shape: bf16[192,192], index: 2, kind: input, shape index: {}]
  %s3 = inlined_call_operand.vmem [shape: bf16[2,256,64], index: 3, kind: output, shape index: {}]
  %s4 = sld [smem:[#allocation0]]
  $region45: #{tpu_custom_call.1} parent=0
    _
  %s6 = ssub.s32 1, %s4
  %s7 = scalar_select 0, %s6, %s4
  loop: start=0, step=1, limit=6
  $region2: #{tpu_custom_call.1} parent=0 // loop_pre_header
    _
  $region3: #{tpu_custom_call.1} parent=0 // loop_header
    %s9 = sphi 0, %s13
    %p10 = scmp.ge.s32.totalorder %s9, 6
    %s16 = sphi 0, %s28
    %s17 = sphi 0, %s24
    %s18 = sphi 0, %s16
    %s19 = sphi 0, %s17
    %s20 = sphi 0, %s18
    %s21 = sphi 0, %s19
    %s33 = sphi 0, %s35
    %s36 = sphi 0, %s33
    %s37 = sphi 0, %s36
    %s53 = sphi 0, %s37
    %s65 = sphi 0, %s67
    %s68 = sphi 0, %s65
    %s69 = sphi 0, %s68
    %s85 = sphi 0, %s69
    %s89 = sphi 0, %s89
    %s91 = sphi 0, %s89
    %s92 = sphi 0, %s91
    %s106 = sphi 0, %s92
    %s114 = sphi 0, %s116
    %s117 = sphi 0, %s114
    %s118 = sphi 0, %s117
    %s134 = sphi 0, %s118
  $region4: #{tpu_custom_call.1} parent=0 // loop_header_branch
    %12 = sbr.rel (%p10) target = $region8
  $region5: #{tpu_custom_call.1} parent=0 // loop_body
    %s14 = ssub.s32 %s9, 1
    %s15 = ssub.s32 %s9, 2
    %s22 = sadd.s32 1, %s17
    %p23 = scmp.ge.s32.totalorder %s22, 2
    %s24 = scalar_select %p23, 0, %s22
    %s25 = sadd.s32 1, %s16
    %s26 = scalar_select %p23, %s25, %s16
    %p27 = scmp.ge.s32.totalorder %s26, 2
    %s28 = scalar_select %p27, 0, %s26
    %s29 = ssub.s32 %s16, %s28
    %s30 = ssub.s32 %s17, %s24
    %s31 = sor.u32 %s29, %s30
    %p32 = scmp.eq.s32.totalorder %s31, 0
    %s34 = sadd.s32 %s33, 1
    %s35 = scalar_select %p32, %s33, %s34
    %p38 = pneg %p32
    %p39 = scmp.eq.s32.totalorder %s9, 3
    %p40 = por %p38, %p39
    %p41 = scmp.ne.s32.totalorder %s33, %s36
    %p42 = scmp.eq.s32.totalorder %s9, 0
    %p43 = por %p41, %p42
    %p44 = scmp.ne.s32.totalorder %s33, %s36
    %p45 = scmp.eq.s32.totalorder %s14, 3
    %p46 = por %p44, %p45
    %p47 = scmp.ne.s32.totalorder %s36, %s37
    %p48 = scmp.eq.s32.totalorder %s14, 0
    %p49 = por %p47, %p48
    %p50 = scmp.ne.s32.totalorder %s36, %s37
    %p51 = scmp.eq.s32.totalorder %s15, 3
    %p52 = por %p50, %p51
    %p54 = scmp.ne.s32.totalorder %s37, %s53
    %p55 = scmp.eq.s32.totalorder %s15, 0
    %p56 = por %p54, %p55
    %s57 = sadd.s32 %s17, 1
    %s58 = smul.u32 %s57, 4
    %s59 = sadd.s32 %s24, 1
    %s60 = smul.u32 %s59, 4
    %s61 = ssub.s32 %s16, %s28
    %s62 = ssub.s32 %s58, %s60
    %s63 = sor.u32 %s61, %s62
    %p64 = scmp.eq.s32.totalorder %s63, 0
    %s66 = sadd.s32 %s65, 1
    %s67 = scalar_select %p64, %s65, %s66
    %p70 = pneg %p64
    %p71 = scmp.eq.s32.totalorder %s9, 3
    %p72 = por %p70, %p71
    %p73 = scmp.ne.s32.totalorder %s65, %s68
    %p74 = scmp.eq.s32.totalorder %s9, 0
    %p75 = por %p73, %p74
    %p76 = scmp.ne.s32.totalorder %s65, %s68
    %p77 = scmp.eq.s32.totalorder %s14, 3
    %p78 = por %p76, %p77
    %p79 = scmp.ne.s32.totalorder %s68, %s69
    %p80 = scmp.eq.s32.totalorder %s14, 0
    %p81 = por %p79, %p80
    %p82 = scmp.ne.s32.totalorder %s68, %s69
    %p83 = scmp.eq.s32.totalorder %s15, 3
    %p84 = por %p82, %p83
    %p86 = scmp.ne.s32.totalorder %s69, %s85
    %p87 = scmp.eq.s32.totalorder %s15, 0
    %p88 = por %p86, %p87
    %s90 = sadd.s32 %s89, 1
    %p93 = scmp.eq.s32.totalorder %s9, 3
    %p94 = scmp.ne.s32.totalorder %s89, %s91
    %p95 = scmp.eq.s32.totalorder %s9, 0
    %p96 = por %p94, %p95
    %p97 = scmp.ne.s32.totalorder %s89, %s91
    %p98 = scmp.eq.s32.totalorder %s14, 3
    %p99 = por %p97, %p98
    %p100 = scmp.ne.s32.totalorder %s91, %s92
    %p101 = scmp.eq.s32.totalorder %s14, 0
    %p102 = por %p100, %p101
    %p103 = scmp.ne.s32.totalorder %s91, %s92
    %p104 = scmp.eq.s32.totalorder %s15, 3
    %p105 = por %p103, %p104
    %p107 = scmp.ne.s32.totalorder %s92, %s106
    %p108 = scmp.eq.s32.totalorder %s15, 0
    %p109 = por %p107, %p108
    %s110 = ssub.s32 %s16, %s28
    %s111 = ssub.s32 %s17, %s24
    %s112 = sor.u32 %s110, %s111
    %p113 = scmp.eq.s32.totalorder %s112, 0
    %s115 = sadd.s32 %s114, 1
    %s116 = scalar_select %p113, %s114, %s115
    %p119 = pneg %p113
    %p120 = scmp.eq.s32.totalorder %s9, 3
    %p121 = por %p119, %p120
    %p122 = scmp.ne.s32.totalorder %s114, %s117
    %p123 = scmp.eq.s32.totalorder %s9, 0
    %p124 = por %p122, %p123
    %p125 = scmp.ne.s32.totalorder %s114, %s117
    %p126 = scmp.eq.s32.totalorder %s14, 3
    %p127 = por %p125, %p126
    %p128 = scmp.ne.s32.totalorder %s117, %s118
    %p129 = scmp.eq.s32.totalorder %s14, 0
    %p130 = por %p128, %p129
    %p131 = scmp.ne.s32.totalorder %s117, %s118
    %p132 = scmp.eq.s32.totalorder %s15, 3
    %p133 = por %p131, %p132
    %p135 = scmp.ne.s32.totalorder %s118, %s134
    %p136 = scmp.eq.s32.totalorder %s15, 0
    %p137 = por %p135, %p136
    %p138 = scmp.le.s32.totalorder 1, %s9
    %p139 = scmp.lt.s32.totalorder %s9, 5
    %p140 = pnand %p138, %p139
    %p141 = pneg %p140
    // Predicated region
    $region9: #{tpu_custom_call.1} parent=5 // pred_check
      _
    $region10: #{tpu_custom_call.1} parent=5 // pred_check_branch
      %143 = sbr.rel (%p140) target = $region12
    $region11: #{tpu_custom_call.1} parent=5 // pred_region
      %s144 = ssub.s32 %s9, 1
      // Predicated region
      $region13: #{tpu_custom_call.1} parent=11 // pred_check
        %p145 = pneg %p102
      $region14: #{tpu_custom_call.1} parent=11 // pred_check_branch
        %147 = sbr.rel (%p145) target = $region16
      $region15: #{tpu_custom_call.1} parent=11 // pred_region
        _
      $region16: #{tpu_custom_call.1} parent=11 // pred_fallthru
        _
    $region12: #{tpu_custom_call.1} parent=5 // pred_fallthru
      _
    %p148 = scmp.lt.s32.totalorder %s9, 4
    // Predicated region
    $region17: #{tpu_custom_call.1} parent=5 // pred_check
      %p149 = pneg %p148
    $region18: #{tpu_custom_call.1} parent=5 // pred_check_branch
      %151 = sbr.rel (%p149) target = $region20
    $region19: #{tpu_custom_call.1} parent=5 // pred_region
      // Predicated region
      $region21: #{tpu_custom_call.1} parent=19 // pred_check
        %p152 = pneg %p43
      $region22: #{tpu_custom_call.1} parent=19 // pred_check_branch
        %154 = sbr.rel (%p152) target = $region24
      $region23: #{tpu_custom_call.1} parent=19 // pred_region
        %s155 = smul.u32 8, %s17
        %s156 = ssub.s32 18, %s155
        %p157 = scmp.lt.s32.totalorder %s156, 8
        %s158 = scalar_select %p157, %s156, 8
        %s159 = smul.u32 64, %s158
        %s160 = smul.u32 %s159, 3
        %p161 = scmp.lt.s32.totalorder %s16, 1
        %s162 = scalar_select %p161, %s16, 1
        %p163 = scmp.lt.s32.totalorder %s155, 17
        %s164 = scalar_select %p163, %s155, 17
        %s165 = smul.addr %s164, 3
        %s166 = smul.addr %s162, 54
        %s167 = sadd.s32 %s165, %s166
        %s168 = smul.addr %s167, 4
        %s169 = scalar_lea.vmem %s0, %s168
        %s170 = smul.u32 8, %s17
        %s171 = ssub.s32 18, %s170
        %p172 = scmp.lt.s32.totalorder %s171, 8
        %s173 = scalar_select %p172, %s171, 8
        %s174 = smul.u32 64, %s173
        %s175 = smul.u32 %s174, 3
      $region24: #{tpu_custom_call.1} parent=19 // pred_fallthru
        _
      // Predicated region
      $region25: #{tpu_custom_call.1} parent=19 // pred_check
        %p176 = pneg %p75
      $region26: #{tpu_custom_call.1} parent=19 // pred_check_branch
        %178 = sbr.rel (%p176) target = $region28
      $region27: #{tpu_custom_call.1} parent=19 // pred_region
        %s179 = sadd.s32 %s17, 1
        %s180 = smul.u32 %s179, 4
        %s181 = smul.u32 2, %s180
        %p182 = scmp.lt.s32.totalorder %s16, 1
        %s183 = scalar_select %p182, %s16, 1
        %p184 = scmp.lt.s32.totalorder %s181, 17
        %s185 = scalar_select %p184, %s181, 17
        %s186 = smul.addr %s185, 3
        %s187 = smul.addr %s183, 54
        %s188 = sadd.s32 %s186, %s187
        %s189 = smul.addr %s188, 4
        %s190 = scalar_lea.vmem %s1, %s189
        %s191 = sadd.s32 %s17, 1
        %s192 = smul.u32 %s191, 4
        %s193 = smul.u32 2, %s192
      $region28: #{tpu_custom_call.1} parent=19 // pred_fallthru
        _
    $region20: #{tpu_custom_call.1} parent=5 // pred_fallthru
      _
    %p194 = scmp.le.s32.totalorder 1, %s9
    %p195 = scmp.lt.s32.totalorder %s9, 5
    %p196 = pnand %p194, %p195
    %p197 = pneg %p196
    // Predicated region
    $region29: #{tpu_custom_call.1} parent=5 // pred_check
      _
    $region30: #{tpu_custom_call.1} parent=5 // pred_check_branch
      %199 = sbr.rel (%p196) target = $region32
    $region31: #{tpu_custom_call.1} parent=5 // pred_region
      %s200 = ssub.s32 %s9, 1
      %s201 = smul.u32 8, %s19
      %s202 = ssub.s32 18, %s201
      %p203 = scmp.lt.s32.totalorder %s202, 8
      %s204 = scalar_select %p203, %s202, 8
      %s205 = smul.u32 64, %s204
      %s206 = smul.u32 %s205, 3
      %p207 = scmp.lt.s32.totalorder %s18, 1
      %s208 = scalar_select %p207, %s18, 1
      %p209 = scmp.lt.s32.totalorder %s201, 17
      %s210 = scalar_select %p209, %s201, 17
      %s211 = smul.addr %s210, 3
      %s212 = smul.addr %s208, 54
      %s213 = sadd.s32 %s211, %s212
      %s214 = smul.addr %s213, 4
      %s215 = scalar_lea.vmem %s0, %s214
      %p216 = pneg %p49
      %p217 = pneg %p46
      %s218 = sadd.s32 %s19, 1
      %s219 = smul.u32 %s218, 4
      %s220 = smul.u32 2, %s219
      %p221 = scmp.lt.s32.totalorder %s18, 1
      %s222 = scalar_select %p221, %s18, 1
      %p223 = scmp.lt.s32.totalorder %s220, 17
      %s224 = scalar_select %p223, %s220, 17
      %s225 = smul.addr %s224, 3
      %s226 = smul.addr %s222, 54
      %s227 = sadd.s32 %s225, %s226
      %s228 = smul.addr %s227, 4
      %s229 = scalar_lea.vmem %s1, %s228
      %p230 = pneg %p81
      %p231 = pneg %p78
      %p232 = pneg %p102
      %p233 = pneg %p99
      %p234 = pneg %p130
      %p235 = pneg %p127
      %s236 = smul.u32 16, %s19
      %p237 = scmp.lt.s32.totalorder %s18, 1
      %s238 = scalar_select %p237, %s18, 1
      %p239 = scmp.lt.s32.totalorder %s236, 31
      %s240 = scalar_select %p239, %s236, 31
      %s241 = smul.addr %s238, 32
      %s242 = sadd.s32 %s240, %s241
      %s243 = smul.addr %s242, 4
      %s244 = scalar_lea.vmem %s3, %s243
      %s245 = smul.u32 8, %s19
      %s246 = ssub.s32 18, %s245
      %p247 = scmp.lt.s32.totalorder %s246, 8
      %s248 = scalar_select %p247, %s246, 8
      %s249 = smul.u32 64, %s248
      %s250 = smul.u32 %s249, 3
      %p251 = scmp.lt.s32.totalorder %s18, 1
      %s252 = scalar_select %p251, %s18, 1
      %p253 = scmp.lt.s32.totalorder %s245, 17
      %s254 = scalar_select %p253, %s245, 17
      %s255 = smul.addr %s254, 3
      %s256 = smul.addr %s252, 54
      %s257 = sadd.s32 %s255, %s256
      %s258 = smul.addr %s257, 4
      %s259 = scalar_lea.vmem %s0, %s258
      %s260 = smul.u32 8, %s19
      %s261 = ssub.s32 18, %s260
      %p262 = scmp.lt.s32.totalorder %s261, 8
      %s263 = scalar_select %p262, %s261, 8
      %s264 = smul.u32 64, %s263
      %s265 = smul.u32 %s264, 3
      %s266 = sadd.s32 %s19, 1
      %s267 = smul.u32 %s266, 4
      %s268 = smul.u32 2, %s267
      %p269 = scmp.lt.s32.totalorder %s18, 1
      %s270 = scalar_select %p269, %s18, 1
      %p271 = scmp.lt.s32.totalorder %s268, 17
      %s272 = scalar_select %p271, %s268, 17
      %s273 = smul.addr %s272, 3
      %s274 = smul.addr %s270, 54
      %s275 = sadd.s32 %s273, %s274
      %s276 = smul.addr %s275, 4
      %s277 = scalar_lea.vmem %s1, %s276
      %s278 = sadd.s32 %s19, 1
      %s279 = smul.u32 %s278, 4
      %s280 = smul.u32 2, %s279
      %s281 = smul.u32 16, %s19
      %p282 = scmp.lt.s32.totalorder %s18, 1
      %s283 = scalar_select %p282, %s18, 1
      %p284 = scmp.lt.s32.totalorder %s281, 31
      %s285 = scalar_select %p284, %s281, 31
      %s286 = smul.addr %s283, 32
      %s287 = sadd.s32 %s285, %s286
      %s288 = smul.addr %s287, 4
      %s289 = scalar_lea.vmem %s3, %s288
      %s290 = smul.u32 16, %s19
      %v292 = vld [vmem:[%s259] sm:$0xf]
      %v293 = vld [vmem:[%s259 + $0x4] sm:$0xf]
      %v294 = vld [vmem:[%s259 + $0xc] sm:$0xf]
      %v295 = vld [vmem:[%s259 + $0x10] sm:$0xf]
      %v296 = vld [vmem:[%s259 + $0x18] sm:$0xf]
      %v297 = vld [vmem:[%s259 + $0x1c] sm:$0xf]
      %v298 = vld [vmem:[%s259 + $0x24] sm:$0xf]
      %v299 = vld [vmem:[%s259 + $0x28] sm:$0xf]
      %v300 = vld [vmem:[%s259 + $0x30] sm:$0xf]
      %v301 = vld [vmem:[%s259 + $0x34] sm:$0xf]
      %v302 = vld [vmem:[%s259 + $0x3c] sm:$0xf]
      %v303 = vld [vmem:[%s259 + $0x40] sm:$0xf]
      %v304 = vld [vmem:[%s259 + $0x48] sm:$0xf]
      %v305 = vld [vmem:[%s259 + $0x4c] sm:$0xf]
      %v306 = vld [vmem:[%s259 + $0x54] sm:$0xf]
      %v307 = vld [vmem:[%s259 + $0x58] sm:$0xf]
      %v324 = vunpack.c.l.b16 %v292
      %v325 = vunpack.c.l.b16 %v293
      %v326 = vunpack.c.l.b16 %v294
      %v327 = vunpack.c.l.b16 %v295
      %v328 = vunpack.c.l.b16 %v296
      %v329 = vunpack.c.l.b16 %v297
      %v330 = vunpack.c.l.b16 %v298
      %v331 = vunpack.c.l.b16 %v299
      %v332 = vunpack.c.l.b16 %v300
      %v333 = vunpack.c.l.b16 %v301
      %v334 = vunpack.c.l.b16 %v302
      %v335 = vunpack.c.l.b16 %v303
      %v336 = vunpack.c.l.b16 %v304
      %v337 = vunpack.c.l.b16 %v305
      %v338 = vunpack.c.l.b16 %v306
      %v339 = vunpack.c.l.b16 %v307
      %v340 = vpack.c.b16 %v325, %v324
      %v341 = vpack.c.b16 %v327, %v326
      %v342 = vpack.c.b16 %v329, %v328
      %v343 = vpack.c.b16 %v331, %v330
      %v344 = vpack.c.b16 %v333, %v332
      %v345 = vpack.c.b16 %v335, %v334
      %v346 = vpack.c.b16 %v337, %v336
      %v347 = vpack.c.b16 %v339, %v338
      %vm356 = vcmask 523264
      %357 = vst.msk [vmem:[#allocation2] sm:$0xff] %vm356, %v340
      %358 = vst.msk [vmem:[#allocation2 + $0x10] sm:$0xff] %vm356, %v341
      %359 = vst.msk [vmem:[#allocation2 + $0x20] sm:$0xff] %vm356, %v342
      %360 = vst.msk [vmem:[#allocation2 + $0x30] sm:$0xff] %vm356, %v343
      %361 = vst.msk [vmem:[#allocation2 + $0x40] sm:$0xff] %vm356, %v344
      %362 = vst.msk [vmem:[#allocation2 + $0x50] sm:$0xff] %vm356, %v345
      %363 = vst.msk [vmem:[#allocation2 + $0x60] sm:$0xff] %vm356, %v346
      %364 = vst.msk [vmem:[#allocation2 + $0x70] sm:$0xff] %vm356, %v347
      %v365 = vld [vmem:[%s277] sm:$0xf]
      %v366 = vld [vmem:[%s277 + $0x4] sm:$0xf]
      %v367 = vld [vmem:[%s277 + $0xc] sm:$0xf]
      %v368 = vld [vmem:[%s277 + $0x10] sm:$0xf]
      %v373 = vunpack.c.l.b16 %v365
      %v374 = vunpack.c.l.b16 %v366
      %v375 = vunpack.c.l.b16 %v367
      %v376 = vunpack.c.l.b16 %v368
      %v377 = vpack.c.b16 %v374, %v373
      %v378 = vpack.c.b16 %v376, %v375
      %381 = vst.msk [vmem:[#allocation2 + $0x80] sm:$0xff] %vm356, %v377
      %382 = vst.msk [vmem:[#allocation2 + $0x90] sm:$0xff] %vm356, %v378
      %v383 = vld [vmem:[%s259] sm:$0xf]
      %v384 = vld [vmem:[%s259 + $0x4] sm:$0xf]
      %v385 = vld [vmem:[%s259 + $0x8] sm:$0x1]
      %v386 = vld [vmem:[%s259 + $0xc] sm:$0xf]
      %v387 = vld [vmem:[%s259 + $0x10] sm:$0xf]
      %v388 = vld [vmem:[%s259 + $0x14] sm:$0x1]
      %v389 = vld [vmem:[%s259 + $0x18] sm:$0xf]
      %v390 = vld [vmem:[%s259 + $0x1c] sm:$0xf]
      %v391 = vld [vmem:[%s259 + $0x20] sm:$0x1]
      %v392 = vld [vmem:[%s259 + $0x24] sm:$0xf]
      %v393 = vld [vmem:[%s259 + $0x28] sm:$0xf]
      %v394 = vld [vmem:[%s259 + $0x2c] sm:$0x1]
      %v395 = vld [vmem:[%s259 + $0x30] sm:$0xf]
      %v396 = vld [vmem:[%s259 + $0x34] sm:$0xf]
      %v397 = vld [vmem:[%s259 + $0x38] sm:$0x1]
      %v398 = vld [vmem:[%s259 + $0x3c] sm:$0xf]
      %v399 = vld [vmem:[%s259 + $0x40] sm:$0xf]
      %v400 = vld [vmem:[%s259 + $0x44] sm:$0x1]
      %v401 = vld [vmem:[%s259 + $0x48] sm:$0xf]
      %v402 = vld [vmem:[%s259 + $0x4c] sm:$0xf]
      %v403 = vld [vmem:[%s259 + $0x50] sm:$0x1]
      %v404 = vld [vmem:[%s259 + $0x54] sm:$0xf]
      %v405 = vld [vmem:[%s259 + $0x58] sm:$0xf]
      %v406 = vld [vmem:[%s259 + $0x5c] sm:$0x1]
      %vm407 = vsmask.f32 3328
      %vm408 = vsmask.f32 7440
      %vm409 = vmor %vm407, %vm408
      %v411 = vshrl.u32 %v383, 16
      %v413 = vrot.slane %v411, 4
      %v414 = vshll.u32 %v383, 16
      %v416 = vrot.slane %v414, 5
      %v417 = vor.u32 %v413, %v416
      %v418 = vrot.slane %v417, 4
      %v420 = vshll.u32 %v384, 16
      %v422 = vrot.slane %v420, 5
      %v423 = vsel %vm409, %v418, %v422
      %v424 = vshrl.u32 %v384, 16
      %v426 = vrot.slane %v424, 4
      %v427 = vor.u32 %v426, %v422
      %v428 = vrot.slane %v427, 4
      %v430 = vshll.u32 %v385, 16
      %v432 = vrot.slane %v430, 5
      %v433 = vsel %vm409, %v428, %v432
      %v435 = vshrl.u32 %v386, 16
      %v437 = vrot.slane %v435, 4
      %v438 = vshll.u32 %v386, 16
      %v440 = vrot.slane %v438, 5
      %v441 = vor.u32 %v437, %v440
      %v442 = vrot.slane %v441, 4
      %v444 = vshll.u32 %v387, 16
      %v446 = vrot.slane %v444, 5
      %v447 = vsel %vm409, %v442, %v446
      %v448 = vshrl.u32 %v387, 16
      %v450 = vrot.slane %v448, 4
      %v451 = vor.u32 %v450, %v446
      %v452 = vrot.slane %v451, 4
      %v454 = vshll.u32 %v388, 16
      %v456 = vrot.slane %v454, 5
      %v457 = vsel %vm409, %v452, %v456
      %v459 = vshrl.u32 %v389, 16
      %v461 = vrot.slane %v459, 4
      %v462 = vshll.u32 %v389, 16
      %v464 = vrot.slane %v462, 5
      %v465 = vor.u32 %v461, %v464
      %v466 = vrot.slane %v465, 4
      %v468 = vshll.u32 %v390, 16
      %v470 = vrot.slane %v468, 5
      %v471 = vsel %vm409, %v466, %v470
      %v472 = vshrl.u32 %v390, 16
      %v474 = vrot.slane %v472, 4
      %v475 = vor.u32 %v474, %v470
      %v476 = vrot.slane %v475, 4
      %v478 = vshll.u32 %v391, 16
      %v480 = vrot.slane %v478, 5
      %v481 = vsel %vm409, %v476, %v480
      %v483 = vshrl.u32 %v392, 16
      %v485 = vrot.slane %v483, 4
      %v486 = vshll.u32 %v392, 16
      %v488 = vrot.slane %v486, 5
      %v489 = vor.u32 %v485, %v488
      %v490 = vrot.slane %v489, 4
      %v492 = vshll.u32 %v393, 16
      %v494 = vrot.slane %v492, 5
      %v495 = vsel %vm409, %v490, %v494
      %v496 = vshrl.u32 %v393, 16
      %v498 = vrot.slane %v496, 4
      %v499 = vor.u32 %v498, %v494
      %v500 = vrot.slane %v499, 4
      %v502 = vshll.u32 %v394, 16
      %v504 = vrot.slane %v502, 5
      %v505 = vsel %vm409, %v500, %v504
      %v507 = vshrl.u32 %v395, 16
      %v509 = vrot.slane %v507, 4
      %v510 = vshll.u32 %v395, 16
      %v512 = vrot.slane %v510, 5
      %v513 = vor.u32 %v509, %v512
      %v514 = vrot.slane %v513, 4
      %v516 = vshll.u32 %v396, 16
      %v518 = vrot.slane %v516, 5
      %v519 = vsel %vm409, %v514, %v518
      %v520 = vshrl.u32 %v396, 16
      %v522 = vrot.slane %v520, 4
      %v523 = vor.u32 %v522, %v518
      %v524 = vrot.slane %v523, 4
      %v526 = vshll.u32 %v397, 16
      %v528 = vrot.slane %v526, 5
      %v529 = vsel %vm409, %v524, %v528
      %v531 = vshrl.u32 %v398, 16
      %v533 = vrot.slane %v531, 4
      %v534 = vshll.u32 %v398, 16
      %v536 = vrot.slane %v534, 5
      %v537 = vor.u32 %v533, %v536
      %v538 = vrot.slane %v537, 4
      %v540 = vshll.u32 %v399, 16
      %v542 = vrot.slane %v540, 5
      %v543 = vsel %vm409, %v538, %v542
      %v544 = vshrl.u32 %v399, 16
      %v546 = vrot.slane %v544, 4
      %v547 = vor.u32 %v546, %v542
      %v548 = vrot.slane %v547, 4
      %v550 = vshll.u32 %v400, 16
      %v552 = vrot.slane %v550, 5
      %v553 = vsel %vm409, %v548, %v552
      %v555 = vshrl.u32 %v401, 16
      %v557 = vrot.slane %v555, 4
      %v558 = vshll.u32 %v401, 16
      %v560 = vrot.slane %v558, 5
      %v561 = vor.u32 %v557, %v560
      %v562 = vrot.slane %v561, 4
      %v564 = vshll.u32 %v402, 16
      %v566 = vrot.slane %v564, 5
      %v567 = vsel %vm409, %v562, %v566
      %v568 = vshrl.u32 %v402, 16
      %v570 = vrot.slane %v568, 4
      %v571 = vor.u32 %v570, %v566
      %v572 = vrot.slane %v571, 4
      %v574 = vshll.u32 %v403, 16
      %v576 = vrot.slane %v574, 5
      %v577 = vsel %vm409, %v572, %v576
      %v579 = vshrl.u32 %v404, 16
      %v581 = vrot.slane %v579, 4
      %v582 = vshll.u32 %v404, 16
      %v584 = vrot.slane %v582, 5
      %v585 = vor.u32 %v581, %v584
      %v586 = vrot.slane %v585, 4
      %v588 = vshll.u32 %v405, 16
      %v590 = vrot.slane %v588, 5
      %v591 = vsel %vm409, %v586, %v590
      %v592 = vshrl.u32 %v405, 16
      %v594 = vrot.slane %v592, 4
      %v595 = vor.u32 %v594, %v590
      %v596 = vrot.slane %v595, 4
      %v598 = vshll.u32 %v406, 16
      %v600 = vrot.slane %v598, 5
      %v601 = vsel %vm409, %v596, %v600
      %v602 = vunpack.c.l.b16 %v423
      %v603 = vunpack.c.l.b16 %v433
      %v604 = vunpack.c.l.b16 %v447
      %v605 = vunpack.c.l.b16 %v457
      %v606 = vunpack.c.l.b16 %v471
      %v607 = vunpack.c.l.b16 %v481
      %v608 = vunpack.c.l.b16 %v495
      %v609 = vunpack.c.l.b16 %v505
      %v610 = vunpack.c.l.b16 %v519
      %v611 = vunpack.c.l.b16 %v529
      %v612 = vunpack.c.l.b16 %v543
      %v613 = vunpack.c.l.b16 %v553
      %v614 = vunpack.c.l.b16 %v567
      %v615 = vunpack.c.l.b16 %v577
      %v616 = vunpack.c.l.b16 %v591
      %v617 = vunpack.c.l.b16 %v601
      %v618 = vpack.c.b16 %v603, %v602
      %v619 = vpack.c.b16 %v605, %v604
      %v620 = vpack.c.b16 %v607, %v606
      %v621 = vpack.c.b16 %v609, %v608
      %v622 = vpack.c.b16 %v611, %v610
      %v623 = vpack.c.b16 %v613, %v612
      %v624 = vpack.c.b16 %v615, %v614
      %v625 = vpack.c.b16 %v617, %v616
      %626 = vrot.lane.b32.xlu0 %v618, 64
      %v627 = vpop.permute.xlu0 %626
      %628 = vrot.lane.b32.xlu0 %v619, 64
      %v629 = vpop.permute.xlu0 %628
      %630 = vrot.lane.b32.xlu0 %v620, 64
      %v631 = vpop.permute.xlu0 %630
      %632 = vrot.lane.b32.xlu0 %v621, 64
      %v633 = vpop.permute.xlu0 %632
      %634 = vrot.lane.b32.xlu0 %v622, 64
      %v635 = vpop.permute.xlu0 %634
      %636 = vrot.lane.b32.xlu0 %v623, 64
      %v637 = vpop.permute.xlu0 %636
      %638 = vrot.lane.b32.xlu0 %v624, 64
      %v639 = vpop.permute.xlu0 %638
      %640 = vrot.lane.b32.xlu0 %v625, 64
      %v641 = vpop.permute.xlu0 %640
      %vm650 = vcmask 1048064
      %651 = vst.msk [vmem:[#allocation2] sm:$0xff] %vm650, %v627
      %652 = vst.msk [vmem:[#allocation2 + $0x10] sm:$0xff] %vm650, %v629
      %653 = vst.msk [vmem:[#allocation2 + $0x20] sm:$0xff] %vm650, %v631
      %654 = vst.msk [vmem:[#allocation2 + $0x30] sm:$0xff] %vm650, %v633
      %655 = vst.msk [vmem:[#allocation2 + $0x40] sm:$0xff] %vm650, %v635
      %656 = vst.msk [vmem:[#allocation2 + $0x50] sm:$0xff] %vm650, %v637
      %657 = vst.msk [vmem:[#allocation2 + $0x60] sm:$0xff] %vm650, %v639
      %658 = vst.msk [vmem:[#allocation2 + $0x70] sm:$0xff] %vm650, %v641
      %v659 = vld [vmem:[%s277] sm:$0xf]
      %v660 = vld [vmem:[%s277 + $0x4] sm:$0xf]
      %v661 = vld [vmem:[%s277 + $0x8] sm:$0x1]
      %v662 = vld [vmem:[%s277 + $0xc] sm:$0xf]
      %v663 = vld [vmem:[%s277 + $0x10] sm:$0xf]
      %v664 = vld [vmem:[%s277 + $0x14] sm:$0x1]
      %v666 = vshrl.u32 %v659, 16
      %v668 = vrot.slane %v666, 4
      %v669 = vshll.u32 %v659, 16
      %v671 = vrot.slane %v669, 5
      %v672 = vor.u32 %v668, %v671
      %v673 = vrot.slane %v672, 4
      %v675 = vshll.u32 %v660, 16
      %v677 = vrot.slane %v675, 5
      %v678 = vsel %vm409, %v673, %v677
      %v679 = vshrl.u32 %v660, 16
      %v681 = vrot.slane %v679, 4
      %v682 = vor.u32 %v681, %v677
      %v683 = vrot.slane %v682, 4
      %v685 = vshll.u32 %v661, 16
      %v687 = vrot.slane %v685, 5
      %v688 = vsel %vm409, %v683, %v687
      %v690 = vshrl.u32 %v662, 16
      %v692 = vrot.slane %v690, 4
      %v693 = vshll.u32 %v662, 16
      %v695 = vrot.slane %v693, 5
      %v696 = vor.u32 %v692, %v695
      %v697 = vrot.slane %v696, 4
      %v699 = vshll.u32 %v663, 16
      %v701 = vrot.slane %v699, 5
      %v702 = vsel %vm409, %v697, %v701
      %v703 = vshrl.u32 %v663, 16
      %v705 = vrot.slane %v703, 4
      %v706 = vor.u32 %v705, %v701
      %v707 = vrot.slane %v706, 4
      %v709 = vshll.u32 %v664, 16
      %v711 = vrot.slane %v709, 5
      %v712 = vsel %vm409, %v707, %v711
      %v713 = vunpack.c.l.b16 %v678
      %v714 = vunpack.c.l.b16 %v688
      %v715 = vunpack.c.l.b16 %v702
      %v716 = vunpack.c.l.b16 %v712
      %v717 = vpack.c.b16 %v714, %v713
      %v718 = vpack.c.b16 %v716, %v715
      %719 = vrot.lane.b32.xlu0 %v717, 64
      %v720 = vpop.permute.xlu0 %719
      %721 = vrot.lane.b32.xlu0 %v718, 64
      %v722 = vpop.permute.xlu0 %721
      %725 = vst.msk [vmem:[#allocation2 + $0x80] sm:$0xff] %vm650, %v720
      %726 = vst.msk [vmem:[#allocation2 + $0x90] sm:$0xff] %vm650, %v722
      %v727 = vld [vmem:[%s259] sm:$0xe]
      %v728 = vld [vmem:[%s259 + $0x4] sm:$0xf]
      %v729 = vld [vmem:[%s259 + $0x8] sm:$0x1]
      %v730 = vld [vmem:[%s259 + $0xc] sm:$0xe]
      %v731 = vld [vmem:[%s259 + $0x10] sm:$0xf]
      %v732 = vld [vmem:[%s259 + $0x14] sm:$0x1]
      %v733 = vld [vmem:[%s259 + $0x18] sm:$0xe]
      %v734 = vld [vmem:[%s259 + $0x1c] sm:$0xf]
      %v735 = vld [vmem:[%s259 + $0x20] sm:$0x1]
      %v736 = vld [vmem:[%s259 + $0x24] sm:$0xe]
      %v737 = vld [vmem:[%s259 + $0x28] sm:$0xf]
      %v738 = vld [vmem:[%s259 + $0x2c] sm:$0x1]
      %v739 = vld [vmem:[%s259 + $0x30] sm:$0xe]
      %v740 = vld [vmem:[%s259 + $0x34] sm:$0xf]
      %v741 = vld [vmem:[%s259 + $0x38] sm:$0x1]
      %v742 = vld [vmem:[%s259 + $0x3c] sm:$0xe]
      %v743 = vld [vmem:[%s259 + $0x40] sm:$0xf]
      %v744 = vld [vmem:[%s259 + $0x44] sm:$0x1]
      %v745 = vld [vmem:[%s259 + $0x48] sm:$0xe]
      %v746 = vld [vmem:[%s259 + $0x4c] sm:$0xf]
      %v747 = vld [vmem:[%s259 + $0x50] sm:$0x1]
      %v748 = vld [vmem:[%s259 + $0x54] sm:$0xe]
      %v749 = vld [vmem:[%s259 + $0x58] sm:$0xf]
      %v750 = vld [vmem:[%s259 + $0x5c] sm:$0x1]
      %vm775 = vcmask 1042432
      %vm776 = vcmask 1046532
      %vm777 = vmor %vm775, %vm776
      %v778 = vrot.slane %v727, 5
      %v779 = vrot.slane %v778, 4
      %v780 = vrot.slane %v728, 5
      %v781 = vsel %vm777, %v779, %v780
      %v782 = vrot.slane %v780, 4
      %v783 = vrot.slane %v729, 5
      %v784 = vsel %vm777, %v782, %v783
      %v785 = vrot.slane %v730, 5
      %v786 = vrot.slane %v785, 4
      %v787 = vrot.slane %v731, 5
      %v788 = vsel %vm777, %v786, %v787
      %v789 = vrot.slane %v787, 4
      %v790 = vrot.slane %v732, 5
      %v791 = vsel %vm777, %v789, %v790
      %v792 = vrot.slane %v733, 5
      %v793 = vrot.slane %v792, 4
      %v794 = vrot.slane %v734, 5
      %v795 = vsel %vm777, %v793, %v794
      %v796 = vrot.slane %v794, 4
      %v797 = vrot.slane %v735, 5
      %v798 = vsel %vm777, %v796, %v797
      %v799 = vrot.slane %v736, 5
      %v800 = vrot.slane %v799, 4
      %v801 = vrot.slane %v737, 5
      %v802 = vsel %vm777, %v800, %v801
      %v803 = vrot.slane %v801, 4
      %v804 = vrot.slane %v738, 5
      %v805 = vsel %vm777, %v803, %v804
      %v806 = vrot.slane %v739, 5
      %v807 = vrot.slane %v806, 4
      %v808 = vrot.slane %v740, 5
      %v809 = vsel %vm777, %v807, %v808
      %v810 = vrot.slane %v808, 4
      %v811 = vrot.slane %v741, 5
      %v812 = vsel %vm777, %v810, %v811
      %v813 = vrot.slane %v742, 5
      %v814 = vrot.slane %v813, 4
      %v815 = vrot.slane %v743, 5
      %v816 = vsel %vm777, %v814, %v815
      %v817 = vrot.slane %v815, 4
      %v818 = vrot.slane %v744, 5
      %v819 = vsel %vm777, %v817, %v818
      %v820 = vrot.slane %v745, 5
      %v821 = vrot.slane %v820, 4
      %v822 = vrot.slane %v746, 5
      %v823 = vsel %vm777, %v821, %v822
      %v824 = vrot.slane %v822, 4
      %v825 = vrot.slane %v747, 5
      %v826 = vsel %vm777, %v824, %v825
      %v827 = vrot.slane %v748, 5
      %v828 = vrot.slane %v827, 4
      %v829 = vrot.slane %v749, 5
      %v830 = vsel %vm777, %v828, %v829
      %v831 = vrot.slane %v829, 4
      %v832 = vrot.slane %v750, 5
      %v833 = vsel %vm777, %v831, %v832
      %v834 = vunpack.c.l.b16 %v781
      %v835 = vunpack.c.l.b16 %v784
      %v836 = vunpack.c.l.b16 %v788
      %v837 = vunpack.c.l.b16 %v791
      %v838 = vunpack.c.l.b16 %v795
      %v839 = vunpack.c.l.b16 %v798
      %v840 = vunpack.c.l.b16 %v802
      %v841 = vunpack.c.l.b16 %v805
      %v842 = vunpack.c.l.b16 %v809
      %v843 = vunpack.c.l.b16 %v812
      %v844 = vunpack.c.l.b16 %v816
      %v845 = vunpack.c.l.b16 %v819
      %v846 = vunpack.c.l.b16 %v823
      %v847 = vunpack.c.l.b16 %v826
      %v848 = vunpack.c.l.b16 %v830
      %v849 = vunpack.c.l.b16 %v833
      %v850 = vpack.c.b16 %v835, %v834
      %v851 = vpack.c.b16 %v837, %v836
      %v852 = vpack.c.b16 %v839, %v838
      %v853 = vpack.c.b16 %v841, %v840
      %v854 = vpack.c.b16 %v843, %v842
      %v855 = vpack.c.b16 %v845, %v844
      %v856 = vpack.c.b16 %v847, %v846
      %v857 = vpack.c.b16 %v849, %v848
      %866 = vst.msk [vmem:[#allocation2 + $0x8] sm:$0xff] %vm356, %v850
      %867 = vst.msk [vmem:[#allocation2 + $0x18] sm:$0xff] %vm356, %v851
      %868 = vst.msk [vmem:[#allocation2 + $0x28] sm:$0xff] %vm356, %v852
      %869 = vst.msk [vmem:[#allocation2 + $0x38] sm:$0xff] %vm356, %v853
      %870 = vst.msk [vmem:[#allocation2 + $0x48] sm:$0xff] %vm356, %v854
      %871 = vst.msk [vmem:[#allocation2 + $0x58] sm:$0xff] %vm356, %v855
      %872 = vst.msk [vmem:[#allocation2 + $0x68] sm:$0xff] %vm356, %v856
      %873 = vst.msk [vmem:[#allocation2 + $0x78] sm:$0xff] %vm356, %v857
      %v874 = vld [vmem:[%s277] sm:$0xe]
      %v875 = vld [vmem:[%s277 + $0x4] sm:$0xf]
      %v876 = vld [vmem:[%s277 + $0x8] sm:$0x1]
      %v877 = vld [vmem:[%s277 + $0xc] sm:$0xe]
      %v878 = vld [vmem:[%s277 + $0x10] sm:$0xf]
      %v879 = vld [vmem:[%s277 + $0x14] sm:$0x1]
      %v886 = vrot.slane %v874, 5
      %v887 = vrot.slane %v886, 4
      %v888 = vrot.slane %v875, 5
      %v889 = vsel %vm777, %v887, %v888
      %v890 = vrot.slane %v888, 4
      %v891 = vrot.slane %v876, 5
      %v892 = vsel %vm777, %v890, %v891
      %v893 = vrot.slane %v877, 5
      %v894 = vrot.slane %v893, 4
      %v895 = vrot.slane %v878, 5
      %v896 = vsel %vm777, %v894, %v895
      %v897 = vrot.slane %v895, 4
      %v898 = vrot.slane %v879, 5
      %v899 = vsel %vm777, %v897, %v898
      %v900 = vunpack.c.l.b16 %v889
      %v901 = vunpack.c.l.b16 %v892
      %v902 = vunpack.c.l.b16 %v896
      %v903 = vunpack.c.l.b16 %v899
      %v904 = vpack.c.b16 %v901, %v900
      %v905 = vpack.c.b16 %v903, %v902
      %908 = vst.msk [vmem:[#allocation2 + $0x88] sm:$0xff] %vm356, %v904
      %909 = vst.msk [vmem:[#allocation2 + $0x98] sm:$0xff] %vm356, %v905
      %v910 = vld [vmem:[#allocation2] sm:$0xff]
      %v911 = vld [vmem:[#allocation2 + $0x8] sm:$0xff]
      %v912 = vld [vmem:[#allocation2 + $0x10] sm:$0xff]
      %v913 = vld [vmem:[#allocation2 + $0x18] sm:$0xff]
      %v914 = vld [vmem:[#allocation2 + $0x20] sm:$0xff]
      %v915 = vld [vmem:[#allocation2 + $0x28] sm:$0xff]
      %v916 = vld [vmem:[#allocation2 + $0x30] sm:$0xff]
      %v917 = vld [vmem:[#allocation2 + $0x38] sm:$0xff]
      %v918 = vld [vmem:[#allocation2 + $0x40] sm:$0xff]
      %v919 = vld [vmem:[#allocation2 + $0x48] sm:$0xff]
      %v920 = vld [vmem:[#allocation2 + $0x50] sm:$0xff]
      %v921 = vld [vmem:[#allocation2 + $0x58] sm:$0xff]
      %v922 = vld [vmem:[#allocation2 + $0x60] sm:$0xff]
      %v923 = vld [vmem:[#allocation2 + $0x68] sm:$0xff]
      %v924 = vld [vmem:[#allocation2 + $0x70] sm:$0xff]
      %v925 = vld [vmem:[#allocation2 + $0x78] sm:$0xff]
      %v926 = vld [vmem:[#allocation2 + $0x80] sm:$0xff]
      %v927 = vld [vmem:[#allocation2 + $0x88] sm:$0xff]
      %v928 = vld [vmem:[#allocation2 + $0x90] sm:$0xff]
      %v929 = vld [vmem:[#allocation2 + $0x98] sm:$0xff]
      %v930 = vld [vmem:[%s2] sm:$0xff]
      %v931 = vld [vmem:[%s2 + $0x8] sm:$0xff]
      %v932 = vld [vmem:[%s2 + $0x10] sm:$0xff]
      %v933 = vld [vmem:[%s2 + $0x18] sm:$0xff]
      %v934 = vld [vmem:[%s2 + $0x20] sm:$0xff]
      %v935 = vld [vmem:[%s2 + $0x28] sm:$0xff]
      %v936 = vld [vmem:[%s2 + $0x30] sm:$0xff]
      %v937 = vld [vmem:[%s2 + $0x38] sm:$0xff]
      %v938 = vld [vmem:[%s2 + $0x40] sm:$0xff]
      %v939 = vld [vmem:[%s2 + $0x48] sm:$0xff]
      %v940 = vld [vmem:[%s2 + $0x50] sm:$0xff]
      %v941 = vld [vmem:[%s2 + $0x58] sm:$0xff]
      %v942 = vld [vmem:[%s2 + $0x60] sm:$0xff]
      %v943 = vld [vmem:[%s2 + $0x68] sm:$0xff]
      %v944 = vld [vmem:[%s2 + $0x70] sm:$0xff]
      %v945 = vld [vmem:[%s2 + $0x78] sm:$0xff]
      %v946 = vld [vmem:[%s2 + $0x80] sm:$0xff]
      %v947 = vld [vmem:[%s2 + $0x88] sm:$0xff]
      %v948 = vld [vmem:[%s2 + $0x90] sm:$0xff]
      %v949 = vld [vmem:[%s2 + $0x98] sm:$0xff]
      %v950 = vld [vmem:[%s2 + $0xa0] sm:$0xff]
      %v951 = vld [vmem:[%s2 + $0xa8] sm:$0xff]
      %v952 = vld [vmem:[%s2 + $0xb0] sm:$0xff]
      %v953 = vld [vmem:[%s2 + $0xb8] sm:$0xff]
      %v978 = vunpack.c.l.b16 %v930
      %v979 = vunpack.c.h.b16 %v930
      %v980 = vunpack.c.l.b16 %v931
      %v981 = vunpack.c.h.b16 %v931
      %v982 = vunpack.c.l.b16 %v932
      %v983 = vunpack.c.h.b16 %v932
      %v984 = vunpack.c.l.b16 %v933
      %v985 = vunpack.c.h.b16 %v933
      %v986 = vunpack.c.l.b16 %v934
      %v987 = vunpack.c.h.b16 %v934
      %v988 = vunpack.c.l.b16 %v935
      %v989 = vunpack.c.h.b16 %v935
      %v990 = vunpack.c.l.b16 %v936
      %v991 = vunpack.c.h.b16 %v936
      %v992 = vunpack.c.l.b16 %v937
      %v993 = vunpack.c.h.b16 %v937
      %v994 = vunpack.c.l.b16 %v938
      %v995 = vunpack.c.h.b16 %v938
      %v996 = vunpack.c.l.b16 %v939
      %v997 = vunpack.c.h.b16 %v939
      %v998 = vunpack.c.l.b16 %v940
      %v999 = vunpack.c.h.b16 %v940
      %v1000 = vunpack.c.l.b16 %v941
      %v1001 = vunpack.c.h.b16 %v941
      %v1002 = vunpack.c.l.b16 %v942
      %v1003 = vunpack.c.h.b16 %v942
      %v1004 = vunpack.c.l.b16 %v943
      %v1005 = vunpack.c.h.b16 %v943
      %v1006 = vunpack.c.l.b16 %v944
      %v1007 = vunpack.c.h.b16 %v944
      %v1008 = vunpack.c.l.b16 %v945
      %v1009 = vunpack.c.h.b16 %v945
      %v1010 = vunpack.c.l.b16 %v946
      %v1011 = vunpack.c.h.b16 %v946
      %v1012 = vunpack.c.l.b16 %v947
      %v1013 = vunpack.c.h.b16 %v947
      %v1014 = vunpack.c.l.b16 %v948
      %v1015 = vunpack.c.h.b16 %v948
      %v1016 = vunpack.c.l.b16 %v949
      %v1017 = vunpack.c.h.b16 %v949
      %v1018 = vunpack.c.l.b16 %v950
      %v1019 = vunpack.c.h.b16 %v950
      %v1020 = vunpack.c.l.b16 %v951
      %v1021 = vunpack.c.h.b16 %v951
      %v1022 = vunpack.c.l.b16 %v952
      %v1023 = vunpack.c.h.b16 %v952
      %v1024 = vunpack.c.l.b16 %v953
      %v1025 = vunpack.c.h.b16 %v953
      %v1026 = vpack.c.b16 %v980, %v978
      %v1027 = vpack.c.b16 %v981, %v979
      %v1028 = vpack.c.b16 %v984, %v982
      %v1029 = vpack.c.b16 %v985, %v983
      %v1030 = vpack.c.b16 %v988, %v986
      %v1031 = vpack.c.b16 %v989, %v987
      %v1032 = vpack.c.b16 %v992, %v990
      %v1033 = vpack.c.b16 %v993, %v991
      %v1034 = vpack.c.b16 %v996, %v994
      %v1035 = vpack.c.b16 %v997, %v995
      %v1036 = vpack.c.b16 %v1000, %v998
      %v1037 = vpack.c.b16 %v1001, %v999
      %v1038 = vpack.c.b16 %v1004, %v1002
      %v1039 = vpack.c.b16 %v1005, %v1003
      %v1040 = vpack.c.b16 %v1008, %v1006
      %v1041 = vpack.c.b16 %v1009, %v1007
      %v1042 = vpack.c.b16 %v1012, %v1010
      %v1043 = vpack.c.b16 %v1013, %v1011
      %v1044 = vpack.c.b16 %v1016, %v1014
      %v1045 = vpack.c.b16 %v1017, %v1015
      %v1046 = vpack.c.b16 %v1020, %v1018
      %v1047 = vpack.c.b16 %v1021, %v1019
      %v1048 = vpack.c.b16 %v1024, %v1022
      %v1049 = vpack.c.b16 %v1025, %v1023
      %v1075 = vsel %vm356, %v911, 0
      %v1078 = vsel %vm356, %v913, 0
      %v1081 = vsel %vm356, %v915, 0
      %v1084 = vsel %vm356, %v917, 0
      %v1087 = vsel %vm356, %v919, 0
      %v1090 = vsel %vm356, %v921, 0
      %v1093 = vsel %vm356, %v923, 0
      %v1096 = vsel %vm356, %v925, 0
      %v1099 = vsel %vm356, %v927, 0
      %v1102 = vsel %vm356, %v929, 0
      %1104 = vmatprep.subr.bf16.mxu0 %v1027
      %1105 = vmatpush1.bf16.msra.mxu0 %v1026
      %1106 = vmatprep.subr.bf16.mxu0 %v1029
      %1107 = vmatpush1.bf16.msra.mxu0 %v1028
      %1108 = vmatprep.subr.bf16.mxu0 %v1031
      %1109 = vmatpush1.bf16.msra.mxu0 %v1030
      %1110 = vmatprep.subr.bf16.mxu0 %v1033
      %1111 = vmatpush1.bf16.msra.mxu0 %v1032
      %1112 = vmatprep.subr.bf16.mxu0 %v1035
      %1113 = vmatpush1.bf16.msra.mxu0 %v1034
      %1114 = vmatprep.subr.bf16.mxu0 %v1037
      %1115 = vmatpush1.bf16.msra.mxu0 %v1036
      %1116 = vmatprep.subr.bf16.mxu0 %v1039
      %1117 = vmatpush1.bf16.msra.mxu0 %v1038
      %1118 = vmatprep.subr.bf16.mxu0 %v1041
      %1119 = vmatpush1.bf16.msra.mxu0 %v1040
      %1120 = vmatprep.subr.bf16.mxu0 %v1043
      %1121 = vmatpush1.bf16.msra.mxu0 %v1042
      %1122 = vmatprep.subr.bf16.mxu0 %v1045
      %1123 = vmatpush1.bf16.msra.mxu0 %v1044
      %1124 = vmatprep.subr.bf16.mxu0 %v1047
      %1125 = vmatpush1.bf16.msra.mxu0 %v1046
      %1126 = vmatprep.subr.bf16.mxu0 %v1049
      %1127 = vmatpush1.bf16.msra.mxu0 %v1048
      %1128 = vmatprep.subr.bf16.mxu0 0
      %1129 = vmatpush1.bf16.msra.mxu0 0
      %1130 = vmatprep.subr.bf16.mxu0 0
      %1131 = vmatpush1.bf16.msra.mxu0 0
      %1132 = vmatprep.subr.bf16.mxu0 0
      %1133 = vmatpush1.bf16.msra.mxu0 0
      %1134 = vmatprep.subr.bf16.mxu0 0
      %1135 = vmatpush1.bf16.msra.mxu0 0
      %1136 = vmatprep.mubr.bf16.mxu0 %v1075
      %1137 = vmatmul.mubr.bf16.gmra.mrb[0].mxu0 %v910
      %v1138 = vpop.f32.mrb[0].mxu0
      %v1139 = vadd.f32 0.0, %v1138
      %v1140 = vpop.f32.mrb[0].mxu0
      %v1141 = vadd.f32 0.0, %v1140
      %v1142 = vpop.f32.mrb[0].mxu0
      %v1143 = vadd.f32 0.0, %v1142
      %v1144 = vpop.f32.mrb[0].mxu0
      %v1145 = vadd.f32 0.0, %v1144
      %1146 = vmatprep.mubr.bf16.mxu0 %v1078
      %1147 = vmatmul.mubr.bf16.gmra.mrb[0].mxu0 %v912
      %v1148 = vpop.f32.mrb[0].mxu0
      %v1149 = vadd.f32 0.0, %v1148
      %v1150 = vpop.f32.mrb[0].mxu0
      %v1151 = vadd.f32 0.0, %v1150
      %v1152 = vpop.f32.mrb[0].mxu0
      %v1153 = vadd.f32 0.0, %v1152
      %v1154 = vpop.f32.mrb[0].mxu0
      %v1155 = vadd.f32 0.0, %v1154
      %1156 = vmatprep.mubr.bf16.mxu0 %v1081
      %1157 = vmatmul.mubr.bf16.gmra.mrb[0].mxu0 %v914
      %v1158 = vpop.f32.mrb[0].mxu0
      %v1159 = vadd.f32 0.0, %v1158
      %v1160 = vpop.f32.mrb[0].mxu0
      %v1161 = vadd.f32 0.0, %v1160
      %v1162 = vpop.f32.mrb[0].mxu0
      %v1163 = vadd.f32 0.0, %v1162
      %v1164 = vpop.f32.mrb[0].mxu0
      %v1165 = vadd.f32 0.0, %v1164
      %1166 = vmatprep.mubr.bf16.mxu0 %v1084
      %1167 = vmatmul.mubr.bf16.gmra.mrb[0].mxu0 %v916
      %v1168 = vpop.f32.mrb[0].mxu0
      %v1169 = vadd.f32 0.0, %v1168
      %v1170 = vpop.f32.mrb[0].mxu0
      %v1171 = vadd.f32 0.0, %v1170
      %v1172 = vpop.f32.mrb[0].mxu0
      %v1173 = vadd.f32 0.0, %v1172
      %v1174 = vpop.f32.mrb[0].mxu0
      %v1175 = vadd.f32 0.0, %v1174
      %1176 = vmatprep.mubr.bf16.mxu0 %v1087
      %1177 = vmatmul.mubr.bf16.gmra.mrb[0].mxu0 %v918
      %v1178 = vpop.f32.mrb[0].mxu0
      %v1179 = vadd.f32 0.0, %v1178
      %v1180 = vpop.f32.mrb[0].mxu0
      %v1181 = vadd.f32 0.0, %v1180
      %v1182 = vpop.f32.mrb[0].mxu0
      %v1183 = vadd.f32 0.0, %v1182
      %v1184 = vpop.f32.mrb[0].mxu0
      %v1185 = vadd.f32 0.0, %v1184
      %1186 = vmatprep.mubr.bf16.mxu0 %v1090
      %1187 = vmatmul.mubr.bf16.gmra.mrb[0].mxu0 %v920
      %v1188 = vpop.f32.mrb[0].mxu0
      %v1189 = vadd.f32 0.0, %v1188
      %v1190 = vpop.f32.mrb[0].mxu0
      %v1191 = vadd.f32 0.0, %v1190
      %v1192 = vpop.f32.mrb[0].mxu0
      %v1193 = vadd.f32 0.0, %v1192
      %v1194 = vpop.f32.mrb[0].mxu0
      %v1195 = vadd.f32 0.0, %v1194
      %1196 = vmatprep.mubr.bf16.mxu0 %v1093
      %1197 = vmatmul.mubr.bf16.gmra.mrb[0].mxu0 %v922
      %v1198 = vpop.f32.mrb[0].mxu0
      %v1199 = vadd.f32 0.0, %v1198
      %v1200 = vpop.f32.mrb[0].mxu0
      %v1201 = vadd.f32 0.0, %v1200
      %v1202 = vpop.f32.mrb[0].mxu0
      %v1203 = vadd.f32 0.0, %v1202
      %v1204 = vpop.f32.mrb[0].mxu0
      %v1205 = vadd.f32 0.0, %v1204
      %1206 = vmatprep.mubr.bf16.mxu0 %v1096
      %1207 = vmatmul.mubr.bf16.gmra.mrb[0].mxu0 %v924
      %v1208 = vpop.f32.mrb[0].mxu0
      %v1209 = vadd.f32 0.0, %v1208
      %v1210 = vpop.f32.mrb[0].mxu0
      %v1211 = vadd.f32 0.0, %v1210
      %v1212 = vpop.f32.mrb[0].mxu0
      %v1213 = vadd.f32 0.0, %v1212
      %v1214 = vpop.f32.mrb[0].mxu0
      %v1215 = vadd.f32 0.0, %v1214
      %1216 = vmatprep.mubr.bf16.mxu0 %v1099
      %1217 = vmatmul.mubr.bf16.gmra.mrb[0].mxu0 %v926
      %v1218 = vpop.f32.mrb[0].mxu0
      %v1219 = vadd.f32 0.0, %v1218
      %v1220 = vpop.f32.mrb[0].mxu0
      %v1221 = vadd.f32 0.0, %v1220
      %v1222 = vpop.f32.mrb[0].mxu0
      %v1223 = vadd.f32 0.0, %v1222
      %v1224 = vpop.f32.mrb[0].mxu0
      %v1225 = vadd.f32 0.0, %v1224
      %1226 = vmatprep.mubr.bf16.mxu0 %v1102
      %1227 = vmatmul.mubr.bf16.gmra.mrb[0].mxu0 %v928
      %v1228 = vpop.f32.mrb[0].mxu0
      %v1229 = vadd.f32 0.0, %v1228
      %v1230 = vpop.f32.mrb[0].mxu0
      %v1231 = vadd.f32 0.0, %v1230
      %v1232 = vpop.f32.mrb[0].mxu0
      %v1233 = vadd.f32 0.0, %v1232
      %v1234 = vpop.f32.mrb[0].mxu0
      %v1235 = vadd.f32 0.0, %v1234
      %1236 = vdwg.mxu0
      %1237 = vst [vmem:[#allocation3] sm:$0xff] %v1139
      %1238 = vst.msk [vmem:[#allocation3 + $0x8] sm:$0xff] %vm356, %v1141
      %1239 = vst [vmem:[#allocation3 + $0x10] sm:$0xff] %v1143
      %1240 = vst.msk [vmem:[#allocation3 + $0x18] sm:$0xff] %vm356, %v1145
      %1241 = vst [vmem:[#allocation3 + $0x20] sm:$0xff] %v1149
      %1242 = vst.msk [vmem:[#allocation3 + $0x28] sm:$0xff] %vm356, %v1151
      %1243 = vst [vmem:[#allocation3 + $0x30] sm:$0xff] %v1153
      %1244 = vst.msk [vmem:[#allocation3 + $0x38] sm:$0xff] %vm356, %v1155
      %1245 = vst [vmem:[#allocation3 + $0x40] sm:$0xff] %v1159
      %1246 = vst.msk [vmem:[#allocation3 + $0x48] sm:$0xff] %vm356, %v1161
      %1247 = vst [vmem:[#allocation3 + $0x50] sm:$0xff] %v1163
      %1248 = vst.msk [vmem:[#allocation3 + $0x58] sm:$0xff] %vm356, %v1165
      %1249 = vst [vmem:[#allocation3 + $0x60] sm:$0xff] %v1169
      %1250 = vst.msk [vmem:[#allocation3 + $0x68] sm:$0xff] %vm356, %v1171
      %1251 = vst [vmem:[#allocation3 + $0x70] sm:$0xff] %v1173
      %1252 = vst.msk [vmem:[#allocation3 + $0x78] sm:$0xff] %vm356, %v1175
      %1253 = vst [vmem:[#allocation3 + $0x80] sm:$0xff] %v1179
      %1254 = vst.msk [vmem:[#allocation3 + $0x88] sm:$0xff] %vm356, %v1181
      %1255 = vst [vmem:[#allocation3 + $0x90] sm:$0xff] %v1183
      %1256 = vst.msk [vmem:[#allocation3 + $0x98] sm:$0xff] %vm356, %v1185
      %1257 = vst [vmem:[#allocation3 + $0xa0] sm:$0xff] %v1189
      %1258 = vst.msk [vmem:[#allocation3 + $0xa8] sm:$0xff] %vm356, %v1191
      %1259 = vst [vmem:[#allocation3 + $0xb0] sm:$0xff] %v1193
      %1260 = vst.msk [vmem:[#allocation3 + $0xb8] sm:$0xff] %vm356, %v1195
      %1261 = vst [vmem:[#allocation3 + $0xc0] sm:$0xff] %v1199
      %1262 = vst.msk [vmem:[#allocation3 + $0xc8] sm:$0xff] %vm356, %v1201
      %1263 = vst [vmem:[#allocation3 + $0xd0] sm:$0xff] %v1203
      %1264 = vst.msk [vmem:[#allocation3 + $0xd8] sm:$0xff] %vm356, %v1205
      %1265 = vst [vmem:[#allocation3 + $0xe0] sm:$0xff] %v1209
      %1266 = vst.msk [vmem:[#allocation3 + $0xe8] sm:$0xff] %vm356, %v1211
      %1267 = vst [vmem:[#allocation3 + $0xf0] sm:$0xff] %v1213
      %1268 = vst.msk [vmem:[#allocation3 + $0xf8] sm:$0xff] %vm356, %v1215
      %1269 = vst [vmem:[#allocation3 + $0x100] sm:$0xff] %v1219
      %1270 = vst.msk [vmem:[#allocation3 + $0x108] sm:$0xff] %vm356, %v1221
      %1271 = vst [vmem:[#allocation3 + $0x110] sm:$0xff] %v1223
      %1272 = vst.msk [vmem:[#allocation3 + $0x118] sm:$0xff] %vm356, %v1225
      %1273 = vst [vmem:[#allocation3 + $0x120] sm:$0xff] %v1229
      %1274 = vst.msk [vmem:[#allocation3 + $0x128] sm:$0xff] %vm356, %v1231
      %1275 = vst [vmem:[#allocation3 + $0x130] sm:$0xff] %v1233
      %1276 = vst.msk [vmem:[#allocation3 + $0x138] sm:$0xff] %vm356, %v1235
      %v1277 = vld [vmem:[#allocation3] sm:$0xff]
      %v1278 = vld [vmem:[#allocation3 + $0x10] sm:$0xff]
      %v1279 = vld [vmem:[#allocation3 + $0x20] sm:$0xff]
      %v1280 = vld [vmem:[#allocation3 + $0x30] sm:$0xff]
      %v1281 = vld [vmem:[#allocation3 + $0x40] sm:$0xff]
      %v1282 = vld [vmem:[#allocation3 + $0x50] sm:$0xff]
      %v1283 = vld [vmem:[#allocation3 + $0x60] sm:$0xff]
      %v1284 = vld [vmem:[#allocation3 + $0x70] sm:$0xff]
      %v1285 = vld [vmem:[#allocation3 + $0x80] sm:$0xff]
      %v1286 = vld [vmem:[#allocation3 + $0x90] sm:$0xff]
      %v1287 = vld [vmem:[#allocation3 + $0xa0] sm:$0xff]
      %v1288 = vld [vmem:[#allocation3 + $0xb0] sm:$0xff]
      %v1289 = vld [vmem:[#allocation3 + $0xc0] sm:$0xff]
      %v1290 = vld [vmem:[#allocation3 + $0xd0] sm:$0xff]
      %v1291 = vld [vmem:[#allocation3 + $0xe0] sm:$0xff]
      %v1292 = vld [vmem:[#allocation3 + $0xf0] sm:$0xff]
      %v1293 = vld [vmem:[#allocation3 + $0x100] sm:$0xff]
      %v1294 = vld [vmem:[#allocation3 + $0x110] sm:$0xff]
      %1311 = vrot.lane.b32.xlu0 %v1279, 64
      %v1312 = vpop.permute.xlu0 %1311
      %1313 = vrot.lane.b32.xlu0 %v1280, 64
      %v1314 = vpop.permute.xlu0 %1313
      %1315 = vrot.lane.b32.xlu0 %v1281, 64
      %v1316 = vpop.permute.xlu0 %1315
      %1317 = vrot.lane.b32.xlu0 %v1282, 64
      %v1318 = vpop.permute.xlu0 %1317
      %1319 = vrot.lane.b32.xlu0 %v1283, 64
      %v1320 = vpop.permute.xlu0 %1319
      %1321 = vrot.lane.b32.xlu0 %v1284, 64
      %v1322 = vpop.permute.xlu0 %1321
      %1323 = vrot.lane.b32.xlu0 %v1285, 64
      %v1324 = vpop.permute.xlu0 %1323
      %1325 = vrot.lane.b32.xlu0 %v1286, 64
      %v1326 = vpop.permute.xlu0 %1325
      %1327 = vrot.lane.b32.xlu0 %v1287, 64
      %v1328 = vpop.permute.xlu0 %1327
      %1329 = vrot.lane.b32.xlu0 %v1288, 64
      %v1330 = vpop.permute.xlu0 %1329
      %1331 = vrot.lane.b32.xlu0 %v1289, 64
      %v1332 = vpop.permute.xlu0 %1331
      %1333 = vrot.lane.b32.xlu0 %v1290, 64
      %v1334 = vpop.permute.xlu0 %1333
      %1335 = vrot.lane.b32.xlu0 %v1291, 64
      %v1336 = vpop.permute.xlu0 %1335
      %1337 = vrot.lane.b32.xlu0 %v1292, 64
      %v1338 = vpop.permute.xlu0 %1337
      %1339 = vrot.lane.b32.xlu0 %v1293, 64
      %v1340 = vpop.permute.xlu0 %1339
      %1341 = vrot.lane.b32.xlu0 %v1294, 64
      %v1342 = vpop.permute.xlu0 %1341
      %v1359 = vadd.f32 %v1277, %v1312
      %v1360 = vadd.f32 %v1278, %v1314
      %v1361 = vadd.f32 %v1279, %v1316
      %v1362 = vadd.f32 %v1280, %v1318
      %v1363 = vadd.f32 %v1281, %v1320
      %v1364 = vadd.f32 %v1282, %v1322
      %v1365 = vadd.f32 %v1283, %v1324
      %v1366 = vadd.f32 %v1284, %v1326
      %v1367 = vadd.f32 %v1285, %v1328
      %v1368 = vadd.f32 %v1286, %v1330
      %v1369 = vadd.f32 %v1287, %v1332
      %v1370 = vadd.f32 %v1288, %v1334
      %v1371 = vadd.f32 %v1289, %v1336
      %v1372 = vadd.f32 %v1290, %v1338
      %v1373 = vadd.f32 %v1291, %v1340
      %v1374 = vadd.f32 %v1292, %v1342
      %v1375 = vld [vmem:[#allocation3 + $0x48] sm:$0xff]
      %v1376 = vld [vmem:[#allocation3 + $0x58] sm:$0xff]
      %v1377 = vld [vmem:[#allocation3 + $0x68] sm:$0xff]
      %v1378 = vld [vmem:[#allocation3 + $0x78] sm:$0xff]
      %v1379 = vld [vmem:[#allocation3 + $0x88] sm:$0xff]
      %v1380 = vld [vmem:[#allocation3 + $0x98] sm:$0xff]
      %v1381 = vld [vmem:[#allocation3 + $0xa8] sm:$0xff]
      %v1382 = vld [vmem:[#allocation3 + $0xb8] sm:$0xff]
      %v1383 = vld [vmem:[#allocation3 + $0xc8] sm:$0xff]
      %v1384 = vld [vmem:[#allocation3 + $0xd8] sm:$0xff]
      %v1385 = vld [vmem:[#allocation3 + $0xe8] sm:$0xff]
      %v1386 = vld [vmem:[#allocation3 + $0xf8] sm:$0xff]
      %v1387 = vld [vmem:[#allocation3 + $0x108] sm:$0xff]
      %v1388 = vld [vmem:[#allocation3 + $0x118] sm:$0xff]
      %v1389 = vld [vmem:[#allocation3 + $0x128] sm:$0xff]
      %v1390 = vld [vmem:[#allocation3 + $0x138] sm:$0xff]
      %v1391 = vadd.f32 %v1359, %v1375
      %v1392 = vadd.f32 %v1360, %v1376
      %v1393 = vadd.f32 %v1361, %v1377
      %v1394 = vadd.f32 %v1362, %v1378
      %v1395 = vadd.f32 %v1363, %v1379
      %v1396 = vadd.f32 %v1364, %v1380
      %v1397 = vadd.f32 %v1365, %v1381
      %v1398 = vadd.f32 %v1366, %v1382
      %v1399 = vadd.f32 %v1367, %v1383
      %v1400 = vadd.f32 %v1368, %v1384
      %v1401 = vadd.f32 %v1369, %v1385
      %v1402 = vadd.f32 %v1370, %v1386
      %v1403 = vadd.f32 %v1371, %v1387
      %v1404 = vadd.f32 %v1372, %v1388
      %v1405 = vadd.f32 %v1373, %v1389
      %v1406 = vadd.f32 %v1374, %v1390
      %v1407 = vmax.f32 %v1391, 0.0
      %v1408 = vmax.f32 %v1392, 0.0
      %v1409 = vmax.f32 %v1393, 0.0
      %v1410 = vmax.f32 %v1394, 0.0
      %v1411 = vmax.f32 %v1395, 0.0
      %v1412 = vmax.f32 %v1396, 0.0
      %v1413 = vmax.f32 %v1397, 0.0
      %v1414 = vmax.f32 %v1398, 0.0
      %v1415 = vmax.f32 %v1399, 0.0
      %v1416 = vmax.f32 %v1400, 0.0
      %v1417 = vmax.f32 %v1401, 0.0
      %v1418 = vmax.f32 %v1402, 0.0
      %v1419 = vmax.f32 %v1403, 0.0
      %v1420 = vmax.f32 %v1404, 0.0
      %v1421 = vmax.f32 %v1405, 0.0
      %v1422 = vmax.f32 %v1406, 0.0
      %v1423 = vpack.c.bf16 %v1408, %v1407
      %v1424 = vpack.c.bf16 %v1410, %v1409
      %v1425 = vpack.c.bf16 %v1412, %v1411
      %v1426 = vpack.c.bf16 %v1414, %v1413
      %v1427 = vpack.c.bf16 %v1416, %v1415
      %v1428 = vpack.c.bf16 %v1418, %v1417
      %v1429 = vpack.c.bf16 %v1420, %v1419
      %v1430 = vpack.c.bf16 %v1422, %v1421
      %v1439 = vunpack.c.l.b16 %v1423
      %v1440 = vunpack.c.h.b16 %v1423
      %v1441 = vunpack.c.l.b16 %v1424
      %v1442 = vunpack.c.h.b16 %v1424
      %v1443 = vunpack.c.l.b16 %v1425
      %v1444 = vunpack.c.h.b16 %v1425
      %v1445 = vunpack.c.l.b16 %v1426
      %v1446 = vunpack.c.h.b16 %v1426
      %v1447 = vunpack.c.l.b16 %v1427
      %v1448 = vunpack.c.h.b16 %v1427
      %v1449 = vunpack.c.l.b16 %v1428
      %v1450 = vunpack.c.h.b16 %v1428
      %v1451 = vunpack.c.l.b16 %v1429
      %v1452 = vunpack.c.h.b16 %v1429
      %v1453 = vunpack.c.l.b16 %v1430
      %v1454 = vunpack.c.h.b16 %v1430
      %v1455 = vpack.c.b16 %v1439, %v1439
      %v1456 = vpack.c.b16 %v1440, %v1440
      %v1457 = vpack.c.b16 %v1441, %v1441
      %v1458 = vpack.c.b16 %v1442, %v1442
      %v1459 = vpack.c.b16 %v1443, %v1443
      %v1460 = vpack.c.b16 %v1444, %v1444
      %v1461 = vpack.c.b16 %v1445, %v1445
      %v1462 = vpack.c.b16 %v1446, %v1446
      %v1463 = vpack.c.b16 %v1447, %v1447
      %v1464 = vpack.c.b16 %v1448, %v1448
      %v1465 = vpack.c.b16 %v1449, %v1449
      %v1466 = vpack.c.b16 %v1450, %v1450
      %v1467 = vpack.c.b16 %v1451, %v1451
      %v1468 = vpack.c.b16 %v1452, %v1452
      %v1469 = vpack.c.b16 %v1453, %v1453
      %v1470 = vpack.c.b16 %v1454, %v1454
      %vm1487 = vcmask 519168
      %1488 = vst.msk [vmem:[%s289] sm:$0xf] %vm1487, %v1455
      %1489 = vst.msk [vmem:[%s289 + $0x4] sm:$0xf] %vm1487, %v1456
      %1490 = vst.msk [vmem:[%s289 + $0x8] sm:$0xf] %vm1487, %v1457
      %1491 = vst.msk [vmem:[%s289 + $0xc] sm:$0xf] %vm1487, %v1458
      %1492 = vst.msk [vmem:[%s289 + $0x10] sm:$0xf] %vm1487, %v1459
      %1493 = vst.msk [vmem:[%s289 + $0x14] sm:$0xf] %vm1487, %v1460
      %1494 = vst.msk [vmem:[%s289 + $0x18] sm:$0xf] %vm1487, %v1461
      %1495 = vst.msk [vmem:[%s289 + $0x1c] sm:$0xf] %vm1487, %v1462
      %1496 = vst.msk [vmem:[%s289 + $0x20] sm:$0xf] %vm1487, %v1463
      %1497 = vst.msk [vmem:[%s289 + $0x24] sm:$0xf] %vm1487, %v1464
      %1498 = vst.msk [vmem:[%s289 + $0x28] sm:$0xf] %vm1487, %v1465
      %1499 = vst.msk [vmem:[%s289 + $0x2c] sm:$0xf] %vm1487, %v1466
      %1500 = vst.msk [vmem:[%s289 + $0x30] sm:$0xf] %vm1487, %v1467
      %1501 = vst.msk [vmem:[%s289 + $0x34] sm:$0xf] %vm1487, %v1468
      %1502 = vst.msk [vmem:[%s289 + $0x38] sm:$0xf] %vm1487, %v1469
      %1503 = vst.msk [vmem:[%s289 + $0x3c] sm:$0xf] %vm1487, %v1470
      %s1504 = smul.u32 16, %s19
      %p1505 = scmp.lt.s32.totalorder %s18, 1
      %s1506 = scalar_select %p1505, %s18, 1
      %p1507 = scmp.lt.s32.totalorder %s1504, 31
      %s1508 = scalar_select %p1507, %s1504, 31
      %s1509 = smul.addr %s1506, 32
      %s1510 = sadd.s32 %s1508, %s1509
      %s1511 = smul.addr %s1510, 4
      %s1512 = scalar_lea.vmem %s3, %s1511
      // Predicated region
      $region33: #{tpu_custom_call.1} parent=31 // pred_check
        %p1513 = pneg %p127
      $region34: #{tpu_custom_call.1} parent=31 // pred_check_branch
        %1515 = sbr.rel (%p1513) target = $region36
      $region35: #{tpu_custom_call.1} parent=31 // pred_region
        %s1516 = smul.u32 16, %s19
      $region36: #{tpu_custom_call.1} parent=31 // pred_fallthru
        _
    $region32: #{tpu_custom_call.1} parent=5 // pred_fallthru
      _
    %p1517 = scmp.le.s32.totalorder 2, %s9
    // Predicated region
    $region37: #{tpu_custom_call.1} parent=5 // pred_check
      %p1518 = pneg %p1517
    $region38: #{tpu_custom_call.1} parent=5 // pred_check_branch
      %1520 = sbr.rel (%p1518) target = $region40
    $region39: #{tpu_custom_call.1} parent=5 // pred_region
      %s1521 = ssub.s32 %s9, 2
      // Predicated region
      $region41: #{tpu_custom_call.1} parent=39 // pred_check
        %p1522 = pneg %p133
      $region42: #{tpu_custom_call.1} parent=39 // pred_check_branch
        %1524 = sbr.rel (%p1522) target = $region44
      $region43: #{tpu_custom_call.1} parent=39 // pred_region
        %s1525 = smul.u32 16, %s21
        %p1526 = scmp.lt.s32.totalorder %s20, 1
        %s1527 = scalar_select %p1526, %s20, 1
        %p1528 = scmp.lt.s32.totalorder %s1525, 31
        %s1529 = scalar_select %p1528, %s1525, 31
        %s1530 = smul.addr %s1527, 32
        %s1531 = sadd.s32 %s1529, %s1530
        %s1532 = smul.addr %s1531, 4
        %s1533 = scalar_lea.vmem %s3, %s1532
      $region44: #{tpu_custom_call.1} parent=39 // pred_fallthru
        _
    $region40: #{tpu_custom_call.1} parent=5 // pred_fallthru
      _
  $region6: #{tpu_custom_call.1} parent=0 // loop_footer
    %s13 = sadd.s32 1, %s9
  $region7: #{tpu_custom_call.1} parent=0 // loop_footer_branch
    %8 = sbr.rel target = $region3
  $region8: #{tpu_custom_call.1} parent=0 // loop_exit
    _

</llo_original>
